<compile_context>
chip_gen: v7x
topology: tpu7x:2x2x1
jax: 0.10.0
libtpu: 0.0.40
codegen_flags: <defaults>
</compile_context>

<pallas_src>
import jax
import jax.numpy as jnp
from jax.experimental import pallas as pl
from jax.experimental.pallas import tpu as pltpu

LANE = 128
SUBLANE = 8


def _round_up(n, m):
    return ((n + m - 1) // m) * m


def _ceil_div(a, b):
    return -(-a // b)


def _vmem_limit_bytes():
    """Scoped-VMEM budget: ~3/4 of physical per-TC VMEM (64 MiB v7x, 128 MiB v5e/v6e)."""
    try:
        cap = pltpu.get_tpu_info().vmem_capacity_bytes
        if cap:
            return min(int(cap) * 3 // 4, 112 * 1024 * 1024)
    except Exception:
        pass
    return 48 * 1024 * 1024  # safe on every generation


# ----------------------------------------------------------------------------
# Fused whole-network kernel (one batch tile per grid step)
# ----------------------------------------------------------------------------
def _make_fused_kernel(n_blocks):
    def kernel(x_ref, *refs):
        # refs = [w_emb, b_emb] + [wp_i, wn_i, b_i] * n_blocks
        #        + [wp_K, wn_K, b_K] + [out_ref]
        out_ref = refs[-1]
        it = iter(refs[:-1])

        w_emb = next(it)
        b_emb = next(it)

        # Embedder NormLinear. Scale g/||W||_1 already folded into w_emb (bf16).
        z = jnp.dot(x_ref[...], w_emb[...],
                    preferred_element_type=jnp.float32) + b_emb[...]

        def crelu_matmul(z, wp_ref, wn_ref, b_ref):
            # CReLU without concat: z_neg = z - relu(z) == min(z, 0) (one VPU pass),
            # then two MXU dots against the two resident weight refs.
            zp = jnp.maximum(z, 0.0)
            zn = z - zp
            acc = jnp.dot(zp.astype(jnp.bfloat16), wp_ref[...],
                          preferred_element_type=jnp.float32)
            acc = acc + jnp.dot(zn.astype(jnp.bfloat16), wn_ref[...],
                                preferred_element_type=jnp.float32)
            return acc + b_ref[...]

        # Residual blocks: Z = Z + CReLUNormLinear(relu(Z), min(Z,0)).
        for _ in range(n_blocks):
            wp = next(it); wn = next(it); bb = next(it)
            z = z + crelu_matmul(z, wp, wn, bb)

        # Final CReLU + predictor.
        wp = next(it); wn = next(it); bb = next(it)
        y = crelu_matmul(z, wp, wn, bb)
        out_ref[...] = y.astype(out_ref.dtype)

    return kernel


# ----------------------------------------------------------------------------
# Weight packing (scale folded in, bf16, zero-padded) — done once per forward
# ----------------------------------------------------------------------------
def _pack_linear(w, g, bias, din_p, dout_p):
    din, dout = w.shape
    norm = jnp.sum(jnp.abs(w), axis=0, keepdims=True)           # (1, dout)
    w_eff = (w * (g / norm)).astype(jnp.bfloat16)                # fold g/||W||_1
    w_p = jnp.pad(w_eff, ((0, din_p - din), (0, dout_p - dout)))
    b_p = jnp.pad(bias, ((0, 0), (0, dout_p - dout))).astype(jnp.float32)
    return w_p, b_p


def _pack_crelu(w_pos, w_neg, g, bias, din_p, dout_p):
    din, dout = w_pos.shape
    w_tilde = jnp.maximum(jnp.abs(w_pos), jnp.abs(w_neg))
    norm = jnp.sum(w_tilde, axis=0, keepdims=True)               # (1, dout)
    scale = g / norm
    wp = jnp.pad((w_pos * scale).astype(jnp.bfloat16),
                 ((0, din_p - din), (0, dout_p - dout)))
    wn = jnp.pad((w_neg * scale).astype(jnp.bfloat16),
                 ((0, din_p - din), (0, dout_p - dout)))
    b_p = jnp.pad(bias, ((0, 0), (0, dout_p - dout))).astype(jnp.float32)
    return wp, wn, b_p


# ----------------------------------------------------------------------------
# Full NormResNet forward as a single pallas_call
# ----------------------------------------------------------------------------
def norm_resnet_forward(x, params, *, block_b=512):
    b, din = x.shape
    w_e, g_e, b_e = params["embedder"]
    hid = w_e.shape[1]
    wp_k, wn_k, g_k, b_k = params["predictor"]
    dout = wp_k.shape[1]
    n_blocks = len(params["blocks"])

    din_p = _round_up(din, LANE)
    hid_p = _round_up(hid, LANE)
    dout_p = _round_up(dout, LANE)

    # Balanced batch tile; pad the batch ONCE here, slice ONCE at the end.
    n_tiles = max(1, _ceil_div(b, block_b))
    tb = _round_up(_ceil_div(b, n_tiles), SUBLANE)
    # Give the v7x megacore at least 2 parallel grid steps whenever batch allows.
    if _round_up(b, tb) // tb < 2 and b > SUBLANE:
        tb = _round_up(_ceil_div(b, 2), SUBLANE)
    bp = _round_up(b, tb)

    # Streamed activation input in bf16 (halves HBM traffic for the x tiles).
    x_p = jnp.pad(x.astype(jnp.bfloat16), ((0, bp - b), (0, din_p - din)))

    # Pack all layer weights (resident in VMEM for the whole call).
    operands = []
    w_emb, bias_emb = _pack_linear(w_e, g_e, b_e, din_p, hid_p)
    operands += [w_emb, bias_emb]
    for (wp, wn, g_i, b_i) in params["blocks"]:
        operands += list(_pack_crelu(wp, wn, g_i, b_i, hid_p, hid_p))
    operands += list(_pack_crelu(wp_k, wn_k, g_k, b_k, hid_p, dout_p))

    const_map = lambda i: (0, 0)
    in_specs = [pl.BlockSpec((tb, din_p), lambda i: (i, 0))]      # streamed x tile
    in_specs += [pl.BlockSpec(op.shape, const_map) for op in operands]  # resident
    out_spec = pl.BlockSpec((tb, dout_p), lambda i: (i, 0))

    # Advisory cost estimate so XLA schedules packing/pad/slice around the call.
    flops = 2 * bp * (din_p * hid_p + 2 * n_blocks * hid_p * hid_p
                      + 2 * hid_p * dout_p)
    bytes_accessed = (x_p.size * x_p.dtype.itemsize
                      + sum(op.size * op.dtype.itemsize for op in operands)
                      + bp * dout_p * 4)

    out = pl.pallas_call(
        _make_fused_kernel(n_blocks),
        out_shape=jax.ShapeDtypeStruct((bp, dout_p), jnp.float32),
        grid_spec=pltpu.PrefetchScalarGridSpec(
            num_scalar_prefetch=0,
            grid=(bp // tb,),
            in_specs=in_specs,
            out_specs=out_spec,
        ),
        compiler_params=pltpu.CompilerParams(
            dimension_semantics=("parallel",),        # megacore split on v7x
            vmem_limit_bytes=_vmem_limit_bytes(),
        ),
        cost_estimate=pl.CostEstimate(flops=flops, transcendentals=0,
                                      bytes_accessed=bytes_accessed),
    )(x_p, *operands)

    return out[:b, :dout]


# ----------------------------------------------------------------------------
# Pure-JAX f32 reference (mirrors the PyTorch module math) and parameter init
# ----------------------------------------------------------------------------
def reference_forward(x, params):
    w, g, b = params["embedder"]
    norm = jnp.sum(jnp.abs(w), axis=0, keepdims=True)
    z = x @ (g * w / norm) + b
    for (wp, wn, g_i, b_i) in params["blocks"]:
        wt = jnp.maximum(jnp.abs(wp), jnp.abs(wn))
        norm = jnp.sum(wt, axis=0, keepdims=True)
        zp, zn = jnp.maximum(z, 0.0), jnp.minimum(z, 0.0)
        z = z + zp @ (g_i * wp / norm) + zn @ (g_i * wn / norm) + b_i
    wp, wn, g_k, b_k = params["predictor"]
    wt = jnp.maximum(jnp.abs(wp), jnp.abs(wn))
    norm = jnp.sum(wt, axis=0, keepdims=True)
    zp, zn = jnp.maximum(z, 0.0), jnp.minimum(z, 0.0)
    return zp @ (g_k * wp / norm) + zn @ (g_k * wn / norm) + b_k


def _orthogonal(key, din, dout):
    a = jax.random.normal(key, (max(din, dout), min(din, dout)), jnp.float32)
    q, r = jnp.linalg.qr(a)
    q = q * jnp.sign(jnp.diagonal(r))[None, :]
    return q[:din, :dout] if din >= dout else q.T[:din, :dout]


def init_params(key, input_size, hidden_size, output_size, n_hidden=2):
    ks = iter(jax.random.split(key, 32))
    # Embedder (NormLinear): orthogonal weight; g/bias given small nonzero
    # values so the test exercises every term of the forward math.
    w_e = _orthogonal(next(ks), input_size, hidden_size)
    g_e = 1.0 + 0.1 * jax.random.normal(next(ks), (1, hidden_size), jnp.float32)
    b_e = 0.1 * jax.random.normal(next(ks), (1, hidden_size), jnp.float32)
    blocks = []
    for _ in range(n_hidden - 1):
        w_pos = _orthogonal(next(ks), hidden_size, hidden_size)
        w_neg = w_pos + 0.05 * jax.random.normal(next(ks), w_pos.shape, jnp.float32)
        g_i = 0.5 + 0.1 * jax.random.normal(next(ks), (1, hidden_size), jnp.float32)
        b_i = 0.1 * jax.random.normal(next(ks), (1, hidden_size), jnp.float32)
        blocks.append((w_pos, w_neg, g_i, b_i))
    w_pp = _orthogonal(next(ks), hidden_size, output_size)
    w_pn = w_pp + 0.05 * jax.random.normal(next(ks), w_pp.shape, jnp.float32)
    g_p = 1.0 + 0.1 * jax.random.normal(next(ks), (1, output_size), jnp.float32)
    b_p = 0.1 * jax.random.normal(next(ks), (1, output_size), jnp.float32)
    return {"embedder": (w_e, g_e, b_e), "blocks": blocks,
            "predictor": (w_pp, w_pn, g_p, b_p)}


if __name__ == "__main__":
    key = jax.random.PRNGKey(0)
    k_x, k_p = jax.random.split(key)

    B, DIN, HID, DOUT, NHID = 8, 16, 32, 10, 2   # n_hidden=2 -> one residual block
    x = jax.random.normal(k_x, (B, DIN), dtype=jnp.float32)
    params = init_params(k_p, DIN, HID, DOUT, NHID)

    y = norm_resnet_forward(x, params)
    y = jax.block_until_ready(y)
    assert y.shape == (B, DOUT)

    y_ref = reference_forward(x, params)
    max_err = float(jnp.max(jnp.abs(y - y_ref)))
    # bf16 MXU operands with f32 accumulation -> loose tolerance vs f32 reference.
    assert jnp.allclose(y, y_ref, atol=2e-2, rtol=2e-2), (
        f"mismatch vs reference, max_err={max_err}")

    print("KERNEL_OK")
</pallas_src>

<mosaic_0001>
module attributes {stable_mosaic.version = 11 : i64} {
  func.func @kernel(%arg0: i32, %arg1: memref<8x128xbf16, #tpu.memory_space<vmem>>, %arg2: memref<128x128xbf16, #tpu.memory_space<vmem>>, %arg3: memref<1x128xf32, #tpu.memory_space<vmem>>, %arg4: memref<128x128xbf16, #tpu.memory_space<vmem>>, %arg5: memref<128x128xbf16, #tpu.memory_space<vmem>>, %arg6: memref<1x128xf32, #tpu.memory_space<vmem>>, %arg7: memref<128x128xbf16, #tpu.memory_space<vmem>>, %arg8: memref<128x128xbf16, #tpu.memory_space<vmem>>, %arg9: memref<1x128xf32, #tpu.memory_space<vmem>>, %arg10: memref<8x128xf32, #tpu.memory_space<vmem>>) attributes {dimension_semantics = [#tpu.dimension_semantics<parallel>], iteration_bounds = array<i64: 1>, scalar_prefetch = 0 : i64, scratch_operands = 0 : i64, tpu.core_type = #tpu.core_type<tc>, window_params = [{transform_indices = @transform_0, window_bounds = array<i64: 8, 128>}, {pipeline_mode = #tpu.pipeline_mode<synchronous>, transform_indices = @transform_1, window_bounds = array<i64: 128, 128>}, {pipeline_mode = #tpu.pipeline_mode<synchronous>, transform_indices = @transform_2, window_bounds = array<i64: 1, 128>}, {pipeline_mode = #tpu.pipeline_mode<synchronous>, transform_indices = @transform_3, window_bounds = array<i64: 128, 128>}, {pipeline_mode = #tpu.pipeline_mode<synchronous>, transform_indices = @transform_4, window_bounds = array<i64: 128, 128>}, {pipeline_mode = #tpu.pipeline_mode<synchronous>, transform_indices = @transform_5, window_bounds = array<i64: 1, 128>}, {pipeline_mode = #tpu.pipeline_mode<synchronous>, transform_indices = @transform_6, window_bounds = array<i64: 128, 128>}, {pipeline_mode = #tpu.pipeline_mode<synchronous>, transform_indices = @transform_7, window_bounds = array<i64: 128, 128>}, {pipeline_mode = #tpu.pipeline_mode<synchronous>, transform_indices = @transform_8, window_bounds = array<i64: 1, 128>}, {transform_indices = @transform_9, window_bounds = array<i64: 8, 128>}]} {
    %c0 = arith.constant 0 : index
    %c0_0 = arith.constant 0 : index
    %0 = vector.load %arg1[%c0, %c0_0] : memref<8x128xbf16, #tpu.memory_space<vmem>>, vector<8x128xbf16>
    %c0_1 = arith.constant 0 : index
    %c0_2 = arith.constant 0 : index
    %1 = vector.load %arg2[%c0_1, %c0_2] : memref<128x128xbf16, #tpu.memory_space<vmem>>, vector<128x128xbf16>
    %cst = arith.constant dense<0.000000e+00> : vector<8x128xf32>
    %2 = tpu.matmul %0, %1, %cst {dimension_numbers = #tpu.dot_dimension_numbers<[1], [0], [0], [1], [0, 0, 1, 1], [], []>} : vector<8x128xbf16>, vector<128x128xbf16>, vector<8x128xf32> -> vector<8x128xf32>
    %c0_3 = arith.constant 0 : index
    %c0_4 = arith.constant 0 : index
    %3 = vector.load %arg3[%c0_3, %c0_4] : memref<1x128xf32, #tpu.memory_space<vmem>>, vector<1x128xf32>
    %4 = vector.broadcast %3 : vector<1x128xf32> to vector<8x128xf32>
    %5 = arith.addf %2, %4 : vector<8x128xf32>
    %cst_5 = arith.constant 0.000000e+00 : f32
    %6 = vector.broadcast %cst_5 : f32 to vector<8x128xf32>
    %7 = arith.maximumf %5, %6 : vector<8x128xf32>
    %8 = arith.subf %5, %7 : vector<8x128xf32>
    %9 = arith.truncf %7 : vector<8x128xf32> to vector<8x128xbf16>
    %c0_6 = arith.constant 0 : index
    %c0_7 = arith.constant 0 : index
    %10 = vector.load %arg4[%c0_6, %c0_7] : memref<128x128xbf16, #tpu.memory_space<vmem>>, vector<128x128xbf16>
    %cst_8 = arith.constant dense<0.000000e+00> : vector<8x128xf32>
    %11 = tpu.matmul %9, %10, %cst_8 {dimension_numbers = #tpu.dot_dimension_numbers<[1], [0], [0], [1], [0, 0, 1, 1], [], []>} : vector<8x128xbf16>, vector<128x128xbf16>, vector<8x128xf32> -> vector<8x128xf32>
    %12 = arith.truncf %8 : vector<8x128xf32> to vector<8x128xbf16>
    %c0_9 = arith.constant 0 : index
    %c0_10 = arith.constant 0 : index
    %13 = vector.load %arg5[%c0_9, %c0_10] : memref<128x128xbf16, #tpu.memory_space<vmem>>, vector<128x128xbf16>
    %cst_11 = arith.constant dense<0.000000e+00> : vector<8x128xf32>
    %14 = tpu.matmul %12, %13, %cst_11 {dimension_numbers = #tpu.dot_dimension_numbers<[1], [0], [0], [1], [0, 0, 1, 1], [], []>} : vector<8x128xbf16>, vector<128x128xbf16>, vector<8x128xf32> -> vector<8x128xf32>
    %15 = arith.addf %11, %14 : vector<8x128xf32>
    %c0_12 = arith.constant 0 : index
    %c0_13 = arith.constant 0 : index
    %16 = vector.load %arg6[%c0_12, %c0_13] : memref<1x128xf32, #tpu.memory_space<vmem>>, vector<1x128xf32>
    %17 = vector.broadcast %16 : vector<1x128xf32> to vector<8x128xf32>
    %18 = arith.addf %15, %17 : vector<8x128xf32>
    %19 = arith.addf %5, %18 : vector<8x128xf32>
    %cst_14 = arith.constant 0.000000e+00 : f32
    %20 = vector.broadcast %cst_14 : f32 to vector<8x128xf32>
    %21 = arith.maximumf %19, %20 : vector<8x128xf32>
    %22 = arith.subf %19, %21 : vector<8x128xf32>
    %23 = arith.truncf %21 : vector<8x128xf32> to vector<8x128xbf16>
    %c0_15 = arith.constant 0 : index
    %c0_16 = arith.constant 0 : index
    %24 = vector.load %arg7[%c0_15, %c0_16] : memref<128x128xbf16, #tpu.memory_space<vmem>>, vector<128x128xbf16>
    %cst_17 = arith.constant dense<0.000000e+00> : vector<8x128xf32>
    %25 = tpu.matmul %23, %24, %cst_17 {dimension_numbers = #tpu.dot_dimension_numbers<[1], [0], [0], [1], [0, 0, 1, 1], [], []>} : vector<8x128xbf16>, vector<128x128xbf16>, vector<8x128xf32> -> vector<8x128xf32>
    %26 = arith.truncf %22 : vector<8x128xf32> to vector<8x128xbf16>
    %c0_18 = arith.constant 0 : index
    %c0_19 = arith.constant 0 : index
    %27 = vector.load %arg8[%c0_18, %c0_19] : memref<128x128xbf16, #tpu.memory_space<vmem>>, vector<128x128xbf16>
    %cst_20 = arith.constant dense<0.000000e+00> : vector<8x128xf32>
    %28 = tpu.matmul %26, %27, %cst_20 {dimension_numbers = #tpu.dot_dimension_numbers<[1], [0], [0], [1], [0, 0, 1, 1], [], []>} : vector<8x128xbf16>, vector<128x128xbf16>, vector<8x128xf32> -> vector<8x128xf32>
    %29 = arith.addf %25, %28 : vector<8x128xf32>
    %c0_21 = arith.constant 0 : index
    %c0_22 = arith.constant 0 : index
    %30 = vector.load %arg9[%c0_21, %c0_22] : memref<1x128xf32, #tpu.memory_space<vmem>>, vector<1x128xf32>
    %31 = vector.broadcast %30 : vector<1x128xf32> to vector<8x128xf32>
    %32 = arith.addf %29, %31 : vector<8x128xf32>
    %c0_23 = arith.constant 0 : index
    %c0_24 = arith.constant 0 : index
    %33 = vector.load %arg10[%c0_23, %c0_24] : memref<8x128xf32, #tpu.memory_space<vmem>>, vector<8x128xf32>
    tpu.vector_store %arg10[%c0_23, %c0_24], %32 {strides = array<i32>} : memref<8x128xf32, #tpu.memory_space<vmem>>, vector<8x128xf32>,
    return
  }
  func.func @transform_0(%arg0: i32) -> (i32, i32) {
    %c0_i32 = arith.constant 0 : i32
    %c0_i32_0 = arith.constant 0 : i32
    return %arg0, %c0_i32 : i32, i32
  }
  func.func @transform_1(%arg0: i32) -> (i32, i32) {
    %c0_i32 = arith.constant 0 : i32
    %c0_i32_0 = arith.constant 0 : i32
    %c0_i32_1 = arith.constant 0 : i32
    return %c0_i32, %c0_i32_0 : i32, i32
  }
  func.func @transform_2(%arg0: i32) -> (i32, i32) {
    %c0_i32 = arith.constant 0 : i32
    %c0_i32_0 = arith.constant 0 : i32
    %c0_i32_1 = arith.constant 0 : i32
    return %c0_i32, %c0_i32_0 : i32, i32
  }
  func.func @transform_3(%arg0: i32) -> (i32, i32) {
    %c0_i32 = arith.constant 0 : i32
    %c0_i32_0 = arith.constant 0 : i32
    %c0_i32_1 = arith.constant 0 : i32
    return %c0_i32, %c0_i32_0 : i32, i32
  }
  func.func @transform_4(%arg0: i32) -> (i32, i32) {
    %c0_i32 = arith.constant 0 : i32
    %c0_i32_0 = arith.constant 0 : i32
    %c0_i32_1 = arith.constant 0 : i32
    return %c0_i32, %c0_i32_0 : i32, i32
  }
  func.func @transform_5(%arg0: i32) -> (i32, i32) {
    %c0_i32 = arith.constant 0 : i32
    %c0_i32_0 = arith.constant 0 : i32
    %c0_i32_1 = arith.constant 0 : i32
    return %c0_i32, %c0_i32_0 : i32, i32
  }
  func.func @transform_6(%arg0: i32) -> (i32, i32) {
    %c0_i32 = arith.constant 0 : i32
    %c0_i32_0 = arith.constant 0 : i32
    %c0_i32_1 = arith.constant 0 : i32
    return %c0_i32, %c0_i32_0 : i32, i32
  }
  func.func @transform_7(%arg0: i32) -> (i32, i32) {
    %c0_i32 = arith.constant 0 : i32
    %c0_i32_0 = arith.constant 0 : i32
    %c0_i32_1 = arith.constant 0 : i32
    return %c0_i32, %c0_i32_0 : i32, i32
  }
  func.func @transform_8(%arg0: i32) -> (i32, i32) {
    %c0_i32 = arith.constant 0 : i32
    %c0_i32_0 = arith.constant 0 : i32
    %c0_i32_1 = arith.constant 0 : i32
    return %c0_i32, %c0_i32_0 : i32, i32
  }
  func.func @transform_9(%arg0: i32) -> (i32, i32) {
    %c0_i32 = arith.constant 0 : i32
    %c0_i32_0 = arith.constant 0 : i32
    return %arg0, %c0_i32 : i32, i32
  }
}

</mosaic_0001>

<llo_original>
// kernel: tpu_custom_call.1
$region0: #{tpu_custom_call.1}
  #allocation0 [shape = 'u32[]', space=smem, size = 0x4, offset = 0x4, fixed_abs, tag = 'smem constant byte address 0x4 - core index']
  #allocation1 [shape = 'u32[144,128]{1,0:T(1,128)}', space=vmem, size = 0x12000, scoped, tag = 'internal scratch']
  %s0 = inlined_call_operand.hbm [shape: bf16[8,128], index: 0, kind: input, shape index: {}]
  %s1 = inlined_call_operand.hbm [shape: bf16[128,128], index: 1, kind: input, shape index: {}]
  %s2 = inlined_call_operand.vmem [shape: f32[1,128], index: 2, kind: input, shape index: {}]
  %s3 = inlined_call_operand.hbm [shape: bf16[128,128], index: 3, kind: input, shape index: {}]
  %s4 = inlined_call_operand.hbm [shape: bf16[128,128], index: 4, kind: input, shape index: {}]
  %s5 = inlined_call_operand.vmem [shape: f32[1,128], index: 5, kind: input, shape index: {}]
  %s6 = inlined_call_operand.hbm [shape: bf16[128,128], index: 6, kind: input, shape index: {}]
  %s7 = inlined_call_operand.hbm [shape: bf16[128,128], index: 7, kind: input, shape index: {}]
  %s8 = inlined_call_operand.vmem [shape: f32[1,128], index: 8, kind: input, shape index: {}]
  %s9 = inlined_call_operand.hbm [shape: f32[8,128], index: 9, kind: output, shape index: {}]
  %s10 = sld [smem:[#allocation0]]
  $region70: #{tpu_custom_call.1} parent=0
    _
  %s12 = ssub.s32 1, %s10
  %s13 = scalar_select 0, %s12, %s10
  $region1: #{tpu_custom_call.1} parent=0
    #allocation2 [shape = 'u8[2048]{0}', space=vmem, size = 0x800, scoped, tag = 'input window, operand 0, single buffered']
    #allocation3 [shape = 's32[1]{0}', space=sflag, size = 0x4, scoped, tag = 'scoped memory for tpu_custom_call.1']
    #allocation4 [shape = 's32[1]{0}', space=sflag, size = 0x4, scoped, tag = 'scoped memory for tpu_custom_call.1']
    #allocation5 [shape = 'u8[32768]{0}', space=vmem, size = 0x8000, scoped, tag = 'input window, operand 1, single buffered']
    #allocation6 [shape = 's32[1]{0}', space=sflag, size = 0x4, scoped, tag = 'scoped memory for tpu_custom_call.1']
    #allocation7 [shape = 'u8[32768]{0}', space=vmem, size = 0x8000, scoped, tag = 'input window, operand 3, single buffered']
    #allocation8 [shape = 'u8[32768]{0}', space=vmem, size = 0x8000, scoped, tag = 'input window, operand 4, single buffered']
    #allocation9 [shape = 's32[1]{0}', space=sflag, size = 0x4, scoped, tag = 'scoped memory for tpu_custom_call.1']
    #allocation10 [shape = 'u8[32768]{0}', space=vmem, size = 0x8000, scoped, tag = 'input window, operand 6, single buffered']
    #allocation11 [shape = 'u8[32768]{0}', space=vmem, size = 0x8000, scoped, tag = 'input window, operand 7, single buffered']
    #allocation12 [shape = 's32[1]{0}', space=sflag, size = 0x4, scoped, tag = 'scoped memory for tpu_custom_call.1']
    #allocation13 [shape = 'u8[4096]{0}', space=vmem, size = 0x1000, scoped, tag = 'output window, operand 0, single buffered']
    %14 = vsyncpa [#allocation3], 0
    %15 = vsyncpa [#allocation6], 0
    %16 = vsyncpa [#allocation9], 0
    %17 = vsyncpa [#allocation12], 0
    %18 = vsyncpa [#allocation4], 0
    // Predicated region
    $region2: #{tpu_custom_call.1} parent=1 // pred_check
      _
    $region3: #{tpu_custom_call.1} parent=1 // pred_check_branch
      %20 = sbr.rel (0) target = $region5
    $region4: #{tpu_custom_call.1} parent=1 // pred_region
      %s22 = ssub.s32 64, 64
      %23 = vsyncadd [#allocation3], %s22
      %s25 = sshll.u32 [#allocation2], 4
      %s26 = int_to_ptr.vmem [resolvable:$true] %s25
      %28 = dma.hbm_to_vmem [thread:$0]  %s0, 64, %s26, [#allocation3]
    $region5: #{tpu_custom_call.1} parent=1 // pred_fallthru
      _
    // Predicated region
    $region6: #{tpu_custom_call.1} parent=1 // pred_check
      _
    $region7: #{tpu_custom_call.1} parent=1 // pred_check_branch
      %30 = sbr.rel (0) target = $region9
    $region8: #{tpu_custom_call.1} parent=1 // pred_region
      %s32 = ssub.s32 1024, 1024
      %33 = vsyncadd [#allocation6], %s32
      %s34 = sshll.u32 [#allocation5], 4
      %s35 = int_to_ptr.vmem [resolvable:$true] %s34
      %40 = dma.hbm_to_vmem [thread:$0]  %s1, 1024, %s35, [#allocation6], 64, 64, 4
    $region9: #{tpu_custom_call.1} parent=1 // pred_fallthru
      _
    // Predicated region
    $region10: #{tpu_custom_call.1} parent=1 // pred_check
      _
    $region11: #{tpu_custom_call.1} parent=1 // pred_check_branch
      %42 = sbr.rel (0) target = $region13
    $region12: #{tpu_custom_call.1} parent=1 // pred_region
      _
    $region13: #{tpu_custom_call.1} parent=1 // pred_fallthru
      _
    // Predicated region
    $region14: #{tpu_custom_call.1} parent=1 // pred_check
      _
    $region15: #{tpu_custom_call.1} parent=1 // pred_check_branch
      %44 = sbr.rel (0) target = $region17
    $region16: #{tpu_custom_call.1} parent=1 // pred_region
      %s46 = ssub.s32 1024, 1024
      %47 = vsyncadd [#allocation6], %s46
      %s48 = sshll.u32 [#allocation7], 4
      %s49 = int_to_ptr.vmem [resolvable:$true] %s48
      %54 = dma.hbm_to_vmem [thread:$0]  %s3, 1024, %s49, [#allocation6], 64, 64, 4
    $region17: #{tpu_custom_call.1} parent=1 // pred_fallthru
      _
    // Predicated region
    $region18: #{tpu_custom_call.1} parent=1 // pred_check
      _
    $region19: #{tpu_custom_call.1} parent=1 // pred_check_branch
      %56 = sbr.rel (0) target = $region21
    $region20: #{tpu_custom_call.1} parent=1 // pred_region
      %s58 = ssub.s32 1024, 1024
      %59 = vsyncadd [#allocation9], %s58
      %s60 = sshll.u32 [#allocation8], 4
      %s61 = int_to_ptr.vmem [resolvable:$true] %s60
      %66 = dma.hbm_to_vmem [thread:$0]  %s4, 1024, %s61, [#allocation9], 64, 64, 4
    $region21: #{tpu_custom_call.1} parent=1 // pred_fallthru
      _
    // Predicated region
    $region22: #{tpu_custom_call.1} parent=1 // pred_check
      _
    $region23: #{tpu_custom_call.1} parent=1 // pred_check_branch
      %68 = sbr.rel (0) target = $region25
    $region24: #{tpu_custom_call.1} parent=1 // pred_region
      _
    $region25: #{tpu_custom_call.1} parent=1 // pred_fallthru
      _
    // Predicated region
    $region26: #{tpu_custom_call.1} parent=1 // pred_check
      _
    $region27: #{tpu_custom_call.1} parent=1 // pred_check_branch
      %70 = sbr.rel (0) target = $region29
    $region28: #{tpu_custom_call.1} parent=1 // pred_region
      %s72 = ssub.s32 1024, 1024
      %73 = vsyncadd [#allocation9], %s72
      %s74 = sshll.u32 [#allocation10], 4
      %s75 = int_to_ptr.vmem [resolvable:$true] %s74
      %80 = dma.hbm_to_vmem [thread:$0]  %s6, 1024, %s75, [#allocation9], 64, 64, 4
    $region29: #{tpu_custom_call.1} parent=1 // pred_fallthru
      _
    // Predicated region
    $region30: #{tpu_custom_call.1} parent=1 // pred_check
      _
    $region31: #{tpu_custom_call.1} parent=1 // pred_check_branch
      %82 = sbr.rel (0) target = $region33
    $region32: #{tpu_custom_call.1} parent=1 // pred_region
      %s84 = ssub.s32 1024, 1024
      %85 = vsyncadd [#allocation12], %s84
      %s86 = sshll.u32 [#allocation11], 4
      %s87 = int_to_ptr.vmem [resolvable:$true] %s86
      %92 = dma.hbm_to_vmem [thread:$0]  %s7, 1024, %s87, [#allocation12], 64, 64, 4
    $region33: #{tpu_custom_call.1} parent=1 // pred_fallthru
      _
    // Predicated region
    $region34: #{tpu_custom_call.1} parent=1 // pred_check
      _
    $region35: #{tpu_custom_call.1} parent=1 // pred_check_branch
      %94 = sbr.rel (0) target = $region37
    $region36: #{tpu_custom_call.1} parent=1 // pred_region
      _
    $region37: #{tpu_custom_call.1} parent=1 // pred_fallthru
      _
    // Predicated region
    $region38: #{tpu_custom_call.1} parent=1 // pred_check
      _
    $region39: #{tpu_custom_call.1} parent=1 // pred_check_branch
      %96 = sbr.rel (0) target = $region41
    $region40: #{tpu_custom_call.1} parent=1 // pred_region
      %97 = dma.done [#allocation3], 64
    $region41: #{tpu_custom_call.1} parent=1 // pred_fallthru
      _
    // Predicated region
    $region42: #{tpu_custom_call.1} parent=1 // pred_check
      _
    $region43: #{tpu_custom_call.1} parent=1 // pred_check_branch
      %99 = sbr.rel (0) target = $region45
    $region44: #{tpu_custom_call.1} parent=1 // pred_region
      %100 = dma.done [#allocation6], 1024
    $region45: #{tpu_custom_call.1} parent=1 // pred_fallthru
      _
    // Predicated region
    $region46: #{tpu_custom_call.1} parent=1 // pred_check
      _
    $region47: #{tpu_custom_call.1} parent=1 // pred_check_branch
      %102 = sbr.rel (0) target = $region49
    $region48: #{tpu_custom_call.1} parent=1 // pred_region
      %103 = dma.done [#allocation6], 1024
    $region49: #{tpu_custom_call.1} parent=1 // pred_fallthru
      _
    // Predicated region
    $region50: #{tpu_custom_call.1} parent=1 // pred_check
      _
    $region51: #{tpu_custom_call.1} parent=1 // pred_check_branch
      %105 = sbr.rel (0) target = $region53
    $region52: #{tpu_custom_call.1} parent=1 // pred_region
      %106 = dma.done [#allocation9], 1024
    $region53: #{tpu_custom_call.1} parent=1 // pred_fallthru
      _
    // Predicated region
    $region54: #{tpu_custom_call.1} parent=1 // pred_check
      _
    $region55: #{tpu_custom_call.1} parent=1 // pred_check_branch
      %108 = sbr.rel (0) target = $region57
    $region56: #{tpu_custom_call.1} parent=1 // pred_region
      %109 = dma.done [#allocation9], 1024
    $region57: #{tpu_custom_call.1} parent=1 // pred_fallthru
      _
    // Predicated region
    $region58: #{tpu_custom_call.1} parent=1 // pred_check
      _
    $region59: #{tpu_custom_call.1} parent=1 // pred_check_branch
      %111 = sbr.rel (0) target = $region61
    $region60: #{tpu_custom_call.1} parent=1 // pred_region
      %112 = dma.done [#allocation12], 1024
    $region61: #{tpu_custom_call.1} parent=1 // pred_fallthru
      _
    %v114 = vld [vmem:[#allocation2] sm:$0xf]
    %v115 = vld [vmem:[#allocation5] sm:$0xf]
    %v116 = vld [vmem:[#allocation5 + $0x4] sm:$0xf]
    %v117 = vld [vmem:[#allocation5 + $0x8] sm:$0xf]
    %v118 = vld [vmem:[#allocation5 + $0xc] sm:$0xf]
    %v119 = vld [vmem:[#allocation5 + $0x10] sm:$0xf]
    %v120 = vld [vmem:[#allocation5 + $0x14] sm:$0xf]
    %v121 = vld [vmem:[#allocation5 + $0x18] sm:$0xf]
    %v122 = vld [vmem:[#allocation5 + $0x1c] sm:$0xf]
    %v123 = vld [vmem:[#allocation5 + $0x20] sm:$0xf]
    %v124 = vld [vmem:[#allocation5 + $0x24] sm:$0xf]
    %v125 = vld [vmem:[#allocation5 + $0x28] sm:$0xf]
    %v126 = vld [vmem:[#allocation5 + $0x2c] sm:$0xf]
    %v127 = vld [vmem:[#allocation5 + $0x30] sm:$0xf]
    %v128 = vld [vmem:[#allocation5 + $0x34] sm:$0xf]
    %v129 = vld [vmem:[#allocation5 + $0x38] sm:$0xf]
    %v130 = vld [vmem:[#allocation5 + $0x3c] sm:$0xf]
    %v131 = vld [vmem:[%s2] sm:$0x1]
    %v133 = vlaneseq
    %v134 = vshrl.u32 %v133, 7
    %v135 = vsub.s32 0, %v134
    %v136 = vrot.slane %v131, %v135
    %v154 = vunpack.c.l.b16 %v115
    %v155 = vunpack.c.l.b16 %v116
    %v156 = vunpack.c.l.b16 %v117
    %v157 = vunpack.c.l.b16 %v118
    %v158 = vunpack.c.l.b16 %v119
    %v159 = vunpack.c.l.b16 %v120
    %v160 = vunpack.c.l.b16 %v121
    %v161 = vunpack.c.l.b16 %v122
    %v162 = vunpack.c.l.b16 %v123
    %v163 = vunpack.c.l.b16 %v124
    %v164 = vunpack.c.l.b16 %v125
    %v165 = vunpack.c.l.b16 %v126
    %v166 = vunpack.c.l.b16 %v127
    %v167 = vunpack.c.l.b16 %v128
    %v168 = vunpack.c.l.b16 %v129
    %v169 = vunpack.c.l.b16 %v130
    %v170 = vpack.c.b16 %v155, %v154
    %v171 = vpack.c.b16 %v157, %v156
    %v172 = vpack.c.b16 %v159, %v158
    %v173 = vpack.c.b16 %v161, %v160
    %v174 = vpack.c.b16 %v163, %v162
    %v175 = vpack.c.b16 %v165, %v164
    %v176 = vpack.c.b16 %v167, %v166
    %v177 = vpack.c.b16 %v169, %v168
    %186 = vmatprep.subr.bf16.mxu0 0
    %187 = vmatpush1.bf16.msra.mxu0 %v170
    %188 = vmatprep.subr.bf16.mxu0 0
    %189 = vmatpush1.bf16.msra.mxu0 %v171
    %190 = vmatprep.subr.bf16.mxu0 0
    %191 = vmatpush1.bf16.msra.mxu0 %v172
    %192 = vmatprep.subr.bf16.mxu0 0
    %193 = vmatpush1.bf16.msra.mxu0 %v173
    %194 = vmatprep.subr.bf16.mxu0 0
    %195 = vmatpush1.bf16.msra.mxu0 %v174
    %196 = vmatprep.subr.bf16.mxu0 0
    %197 = vmatpush1.bf16.msra.mxu0 %v175
    %198 = vmatprep.subr.bf16.mxu0 0
    %199 = vmatpush1.bf16.msra.mxu0 %v176
    %200 = vmatprep.subr.bf16.mxu0 0
    %201 = vmatpush1.bf16.msra.mxu0 %v177
    %202 = vmatprep.subr.bf16.mxu0 0
    %203 = vmatpush1.bf16.msra.mxu0 0
    %204 = vmatprep.subr.bf16.mxu0 0
    %205 = vmatpush1.bf16.msra.mxu0 0
    %206 = vmatprep.subr.bf16.mxu0 0
    %207 = vmatpush1.bf16.msra.mxu0 0
    %208 = vmatprep.subr.bf16.mxu0 0
    %209 = vmatpush1.bf16.msra.mxu0 0
    %210 = vmatprep.subr.bf16.mxu0 0
    %211 = vmatpush1.bf16.msra.mxu0 0
    %212 = vmatprep.subr.bf16.mxu0 0
    %213 = vmatpush1.bf16.msra.mxu0 0
    %214 = vmatprep.subr.bf16.mxu0 0
    %215 = vmatpush1.bf16.msra.mxu0 0
    %216 = vmatprep.subr.bf16.mxu0 0
    %217 = vmatpush1.bf16.msra.mxu0 0
    %218 = vmatprep.mubr.bf16.mxu0 0
    %219 = vmatmul.mubr.bf16.gmra.mrb[0].mxu0 %v114
    %v220 = vpop.f32.mrb[0].mxu0
    %v221 = vadd.f32 %v136, %v220
    %v222 = vpop.f32.mrb[0].mxu0
    %v223 = vpop.f32.mrb[0].mxu0
    %v224 = vpop.f32.mrb[0].mxu0
    %225 = vdwg.mxu0
    %v226 = vmax.f32 %v221, 0.0
    %v227 = vsub.f32 %v221, %v226
    %v228 = vpack.c.bf16 %v226, %v226
    %v229 = vld [vmem:[#allocation7] sm:$0xf]
    %v230 = vld [vmem:[#allocation7 + $0x4] sm:$0xf]
    %v231 = vld [vmem:[#allocation7 + $0x8] sm:$0xf]
    %v232 = vld [vmem:[#allocation7 + $0xc] sm:$0xf]
    %v233 = vld [vmem:[#allocation7 + $0x10] sm:$0xf]
    %v234 = vld [vmem:[#allocation7 + $0x14] sm:$0xf]
    %v235 = vld [vmem:[#allocation7 + $0x18] sm:$0xf]
    %v236 = vld [vmem:[#allocation7 + $0x1c] sm:$0xf]
    %v237 = vld [vmem:[#allocation7 + $0x20] sm:$0xf]
    %v238 = vld [vmem:[#allocation7 + $0x24] sm:$0xf]
    %v239 = vld [vmem:[#allocation7 + $0x28] sm:$0xf]
    %v240 = vld [vmem:[#allocation7 + $0x2c] sm:$0xf]
    %v241 = vld [vmem:[#allocation7 + $0x30] sm:$0xf]
    %v242 = vld [vmem:[#allocation7 + $0x34] sm:$0xf]
    %v243 = vld [vmem:[#allocation7 + $0x38] sm:$0xf]
    %v244 = vld [vmem:[#allocation7 + $0x3c] sm:$0xf]
    %v245 = vpack.c.bf16 %v227, %v227
    %v246 = vld [vmem:[#allocation8] sm:$0xf]
    %v247 = vld [vmem:[#allocation8 + $0x4] sm:$0xf]
    %v248 = vld [vmem:[#allocation8 + $0x8] sm:$0xf]
    %v249 = vld [vmem:[#allocation8 + $0xc] sm:$0xf]
    %v250 = vld [vmem:[#allocation8 + $0x10] sm:$0xf]
    %v251 = vld [vmem:[#allocation8 + $0x14] sm:$0xf]
    %v252 = vld [vmem:[#allocation8 + $0x18] sm:$0xf]
    %v253 = vld [vmem:[#allocation8 + $0x1c] sm:$0xf]
    %v254 = vld [vmem:[#allocation8 + $0x20] sm:$0xf]
    %v255 = vld [vmem:[#allocation8 + $0x24] sm:$0xf]
    %v256 = vld [vmem:[#allocation8 + $0x28] sm:$0xf]
    %v257 = vld [vmem:[#allocation8 + $0x2c] sm:$0xf]
    %v258 = vld [vmem:[#allocation8 + $0x30] sm:$0xf]
    %v259 = vld [vmem:[#allocation8 + $0x34] sm:$0xf]
    %v260 = vld [vmem:[#allocation8 + $0x38] sm:$0xf]
    %v261 = vld [vmem:[#allocation8 + $0x3c] sm:$0xf]
    %v278 = vunpack.c.l.b16 %v246
    %v279 = vunpack.c.l.b16 %v247
    %v280 = vunpack.c.l.b16 %v248
    %v281 = vunpack.c.l.b16 %v249
    %v282 = vunpack.c.l.b16 %v250
    %v283 = vunpack.c.l.b16 %v251
    %v284 = vunpack.c.l.b16 %v252
    %v285 = vunpack.c.l.b16 %v253
    %v286 = vunpack.c.l.b16 %v254
    %v287 = vunpack.c.l.b16 %v255
    %v288 = vunpack.c.l.b16 %v256
    %v289 = vunpack.c.l.b16 %v257
    %v290 = vunpack.c.l.b16 %v258
    %v291 = vunpack.c.l.b16 %v259
    %v292 = vunpack.c.l.b16 %v260
    %v293 = vunpack.c.l.b16 %v261
    %v294 = vpack.c.b16 %v279, %v278
    %v295 = vpack.c.b16 %v281, %v280
    %v296 = vpack.c.b16 %v283, %v282
    %v297 = vpack.c.b16 %v285, %v284
    %v298 = vpack.c.b16 %v287, %v286
    %v299 = vpack.c.b16 %v289, %v288
    %v300 = vpack.c.b16 %v291, %v290
    %v301 = vpack.c.b16 %v293, %v292
    %310 = vmatprep.subr.bf16.mxu0 0
    %311 = vmatpush1.bf16.msra.mxu0 %v294
    %312 = vmatprep.subr.bf16.mxu0 0
    %313 = vmatpush1.bf16.msra.mxu0 %v295
    %314 = vmatprep.subr.bf16.mxu0 0
    %315 = vmatpush1.bf16.msra.mxu0 %v296
    %316 = vmatprep.subr.bf16.mxu0 0
    %317 = vmatpush1.bf16.msra.mxu0 %v297
    %318 = vmatprep.subr.bf16.mxu0 0
    %319 = vmatpush1.bf16.msra.mxu0 %v298
    %320 = vmatprep.subr.bf16.mxu0 0
    %321 = vmatpush1.bf16.msra.mxu0 %v299
    %322 = vmatprep.subr.bf16.mxu0 0
    %323 = vmatpush1.bf16.msra.mxu0 %v300
    %324 = vmatprep.subr.bf16.mxu0 0
    %325 = vmatpush1.bf16.msra.mxu0 %v301
    %326 = vmatprep.subr.bf16.mxu0 0
    %327 = vmatpush1.bf16.msra.mxu0 0
    %328 = vmatprep.subr.bf16.mxu0 0
    %329 = vmatpush1.bf16.msra.mxu0 0
    %330 = vmatprep.subr.bf16.mxu0 0
    %331 = vmatpush1.bf16.msra.mxu0 0
    %332 = vmatprep.subr.bf16.mxu0 0
    %333 = vmatpush1.bf16.msra.mxu0 0
    %334 = vmatprep.subr.bf16.mxu0 0
    %335 = vmatpush1.bf16.msra.mxu0 0
    %336 = vmatprep.subr.bf16.mxu0 0
    %337 = vmatpush1.bf16.msra.mxu0 0
    %338 = vmatprep.subr.bf16.mxu0 0
    %339 = vmatpush1.bf16.msra.mxu0 0
    %340 = vmatprep.subr.bf16.mxu0 0
    %341 = vmatpush1.bf16.msra.mxu0 0
    %342 = vmatprep.mubr.bf16.mxu0 0
    %343 = vmatmul.mubr.bf16.gmra.mrb[0].mxu0 %v245
    %v344 = vpop.f32.mrb[0].mxu0
    %v345 = vadd.f32 0.0, %v344
    %v346 = vpop.f32.mrb[0].mxu0
    %v347 = vpop.f32.mrb[0].mxu0
    %v348 = vpop.f32.mrb[0].mxu0
    %349 = vdwg.mxu0
    %v366 = vunpack.c.l.b16 %v229
    %v367 = vunpack.c.l.b16 %v230
    %v368 = vunpack.c.l.b16 %v231
    %v369 = vunpack.c.l.b16 %v232
    %v370 = vunpack.c.l.b16 %v233
    %v371 = vunpack.c.l.b16 %v234
    %v372 = vunpack.c.l.b16 %v235
    %v373 = vunpack.c.l.b16 %v236
    %v374 = vunpack.c.l.b16 %v237
    %v375 = vunpack.c.l.b16 %v238
    %v376 = vunpack.c.l.b16 %v239
    %v377 = vunpack.c.l.b16 %v240
    %v378 = vunpack.c.l.b16 %v241
    %v379 = vunpack.c.l.b16 %v242
    %v380 = vunpack.c.l.b16 %v243
    %v381 = vunpack.c.l.b16 %v244
    %v382 = vpack.c.b16 %v367, %v366
    %v383 = vpack.c.b16 %v369, %v368
    %v384 = vpack.c.b16 %v371, %v370
    %v385 = vpack.c.b16 %v373, %v372
    %v386 = vpack.c.b16 %v375, %v374
    %v387 = vpack.c.b16 %v377, %v376
    %v388 = vpack.c.b16 %v379, %v378
    %v389 = vpack.c.b16 %v381, %v380
    %398 = vmatprep.subr.bf16.mxu0 0
    %399 = vmatpush1.bf16.msra.mxu0 %v382
    %400 = vmatprep.subr.bf16.mxu0 0
    %401 = vmatpush1.bf16.msra.mxu0 %v383
    %402 = vmatprep.subr.bf16.mxu0 0
    %403 = vmatpush1.bf16.msra.mxu0 %v384
    %404 = vmatprep.subr.bf16.mxu0 0
    %405 = vmatpush1.bf16.msra.mxu0 %v385
    %406 = vmatprep.subr.bf16.mxu0 0
    %407 = vmatpush1.bf16.msra.mxu0 %v386
    %408 = vmatprep.subr.bf16.mxu0 0
    %409 = vmatpush1.bf16.msra.mxu0 %v387
    %410 = vmatprep.subr.bf16.mxu0 0
    %411 = vmatpush1.bf16.msra.mxu0 %v388
    %412 = vmatprep.subr.bf16.mxu0 0
    %413 = vmatpush1.bf16.msra.mxu0 %v389
    %414 = vmatprep.subr.bf16.mxu0 0
    %415 = vmatpush1.bf16.msra.mxu0 0
    %416 = vmatprep.subr.bf16.mxu0 0
    %417 = vmatpush1.bf16.msra.mxu0 0
    %418 = vmatprep.subr.bf16.mxu0 0
    %419 = vmatpush1.bf16.msra.mxu0 0
    %420 = vmatprep.subr.bf16.mxu0 0
    %421 = vmatpush1.bf16.msra.mxu0 0
    %422 = vmatprep.subr.bf16.mxu0 0
    %423 = vmatpush1.bf16.msra.mxu0 0
    %424 = vmatprep.subr.bf16.mxu0 0
    %425 = vmatpush1.bf16.msra.mxu0 0
    %426 = vmatprep.subr.bf16.mxu0 0
    %427 = vmatpush1.bf16.msra.mxu0 0
    %428 = vmatprep.subr.bf16.mxu0 0
    %429 = vmatpush1.bf16.msra.mxu0 0
    %430 = vmatprep.mubr.bf16.mxu0 0
    %431 = vmatmul.mubr.bf16.gmra.mrb[0].mxu0 %v228
    %v432 = vpop.f32.mrb[0].mxu0
    %v433 = vadd.f32 %v345, %v432
    %v434 = vpop.f32.mrb[0].mxu0
    %v435 = vpop.f32.mrb[0].mxu0
    %v436 = vpop.f32.mrb[0].mxu0
    %437 = vdwg.mxu0
    %v438 = vld [vmem:[%s5] sm:$0x1]
    %v440 = vlaneseq
    %v441 = vshrl.u32 %v440, 7
    %v442 = vsub.s32 0, %v441
    %v443 = vrot.slane %v438, %v442
    %v445 = vadd.f32 %v433, %v443
    %v446 = vadd.f32 %v221, %v445
    %v447 = vmax.f32 %v446, 0.0
    %v448 = vsub.f32 %v446, %v447
    %v449 = vpack.c.bf16 %v447, %v447
    %v450 = vld [vmem:[#allocation10] sm:$0xf]
    %v451 = vld [vmem:[#allocation10 + $0x4] sm:$0xf]
    %v452 = vld [vmem:[#allocation10 + $0x8] sm:$0xf]
    %v453 = vld [vmem:[#allocation10 + $0xc] sm:$0xf]
    %v454 = vld [vmem:[#allocation10 + $0x10] sm:$0xf]
    %v455 = vld [vmem:[#allocation10 + $0x14] sm:$0xf]
    %v456 = vld [vmem:[#allocation10 + $0x18] sm:$0xf]
    %v457 = vld [vmem:[#allocation10 + $0x1c] sm:$0xf]
    %v458 = vld [vmem:[#allocation10 + $0x20] sm:$0xf]
    %v459 = vld [vmem:[#allocation10 + $0x24] sm:$0xf]
    %v460 = vld [vmem:[#allocation10 + $0x28] sm:$0xf]
    %v461 = vld [vmem:[#allocation10 + $0x2c] sm:$0xf]
    %v462 = vld [vmem:[#allocation10 + $0x30] sm:$0xf]
    %v463 = vld [vmem:[#allocation10 + $0x34] sm:$0xf]
    %v464 = vld [vmem:[#allocation10 + $0x38] sm:$0xf]
    %v465 = vld [vmem:[#allocation10 + $0x3c] sm:$0xf]
    %v466 = vpack.c.bf16 %v448, %v448
    %v467 = vld [vmem:[#allocation11] sm:$0xf]
    %v468 = vld [vmem:[#allocation11 + $0x4] sm:$0xf]
    %v469 = vld [vmem:[#allocation11 + $0x8] sm:$0xf]
    %v470 = vld [vmem:[#allocation11 + $0xc] sm:$0xf]
    %v471 = vld [vmem:[#allocation11 + $0x10] sm:$0xf]
    %v472 = vld [vmem:[#allocation11 + $0x14] sm:$0xf]
    %v473 = vld [vmem:[#allocation11 + $0x18] sm:$0xf]
    %v474 = vld [vmem:[#allocation11 + $0x1c] sm:$0xf]
    %v475 = vld [vmem:[#allocation11 + $0x20] sm:$0xf]
    %v476 = vld [vmem:[#allocation11 + $0x24] sm:$0xf]
    %v477 = vld [vmem:[#allocation11 + $0x28] sm:$0xf]
    %v478 = vld [vmem:[#allocation11 + $0x2c] sm:$0xf]
    %v479 = vld [vmem:[#allocation11 + $0x30] sm:$0xf]
    %v480 = vld [vmem:[#allocation11 + $0x34] sm:$0xf]
    %v481 = vld [vmem:[#allocation11 + $0x38] sm:$0xf]
    %v482 = vld [vmem:[#allocation11 + $0x3c] sm:$0xf]
    %v499 = vunpack.c.l.b16 %v467
    %v500 = vunpack.c.l.b16 %v468
    %v501 = vunpack.c.l.b16 %v469
    %v502 = vunpack.c.l.b16 %v470
    %v503 = vunpack.c.l.b16 %v471
    %v504 = vunpack.c.l.b16 %v472
    %v505 = vunpack.c.l.b16 %v473
    %v506 = vunpack.c.l.b16 %v474
    %v507 = vunpack.c.l.b16 %v475
    %v508 = vunpack.c.l.b16 %v476
    %v509 = vunpack.c.l.b16 %v477
    %v510 = vunpack.c.l.b16 %v478
    %v511 = vunpack.c.l.b16 %v479
    %v512 = vunpack.c.l.b16 %v480
    %v513 = vunpack.c.l.b16 %v481
    %v514 = vunpack.c.l.b16 %v482
    %v515 = vpack.c.b16 %v500, %v499
    %v516 = vpack.c.b16 %v502, %v501
    %v517 = vpack.c.b16 %v504, %v503
    %v518 = vpack.c.b16 %v506, %v505
    %v519 = vpack.c.b16 %v508, %v507
    %v520 = vpack.c.b16 %v510, %v509
    %v521 = vpack.c.b16 %v512, %v511
    %v522 = vpack.c.b16 %v514, %v513
    %531 = vmatprep.subr.bf16.mxu0 0
    %532 = vmatpush1.bf16.msra.mxu0 %v515
    %533 = vmatprep.subr.bf16.mxu0 0
    %534 = vmatpush1.bf16.msra.mxu0 %v516
    %535 = vmatprep.subr.bf16.mxu0 0
    %536 = vmatpush1.bf16.msra.mxu0 %v517
    %537 = vmatprep.subr.bf16.mxu0 0
    %538 = vmatpush1.bf16.msra.mxu0 %v518
    %539 = vmatprep.subr.bf16.mxu0 0
    %540 = vmatpush1.bf16.msra.mxu0 %v519
    %541 = vmatprep.subr.bf16.mxu0 0
    %542 = vmatpush1.bf16.msra.mxu0 %v520
    %543 = vmatprep.subr.bf16.mxu0 0
    %544 = vmatpush1.bf16.msra.mxu0 %v521
    %545 = vmatprep.subr.bf16.mxu0 0
    %546 = vmatpush1.bf16.msra.mxu0 %v522
    %547 = vmatprep.subr.bf16.mxu0 0
    %548 = vmatpush1.bf16.msra.mxu0 0
    %549 = vmatprep.subr.bf16.mxu0 0
    %550 = vmatpush1.bf16.msra.mxu0 0
    %551 = vmatprep.subr.bf16.mxu0 0
    %552 = vmatpush1.bf16.msra.mxu0 0
    %553 = vmatprep.subr.bf16.mxu0 0
    %554 = vmatpush1.bf16.msra.mxu0 0
    %555 = vmatprep.subr.bf16.mxu0 0
    %556 = vmatpush1.bf16.msra.mxu0 0
    %557 = vmatprep.subr.bf16.mxu0 0
    %558 = vmatpush1.bf16.msra.mxu0 0
    %559 = vmatprep.subr.bf16.mxu0 0
    %560 = vmatpush1.bf16.msra.mxu0 0
    %561 = vmatprep.subr.bf16.mxu0 0
    %562 = vmatpush1.bf16.msra.mxu0 0
    %563 = vmatprep.mubr.bf16.mxu0 0
    %564 = vmatmul.mubr.bf16.gmra.mrb[0].mxu0 %v466
    %v565 = vpop.f32.mrb[0].mxu0
    %v566 = vadd.f32 0.0, %v565
    %v567 = vpop.f32.mrb[0].mxu0
    %v568 = vpop.f32.mrb[0].mxu0
    %v569 = vpop.f32.mrb[0].mxu0
    %570 = vdwg.mxu0
    %v587 = vunpack.c.l.b16 %v450
    %v588 = vunpack.c.l.b16 %v451
    %v589 = vunpack.c.l.b16 %v452
    %v590 = vunpack.c.l.b16 %v453
    %v591 = vunpack.c.l.b16 %v454
    %v592 = vunpack.c.l.b16 %v455
    %v593 = vunpack.c.l.b16 %v456
    %v594 = vunpack.c.l.b16 %v457
    %v595 = vunpack.c.l.b16 %v458
    %v596 = vunpack.c.l.b16 %v459
    %v597 = vunpack.c.l.b16 %v460
    %v598 = vunpack.c.l.b16 %v461
    %v599 = vunpack.c.l.b16 %v462
    %v600 = vunpack.c.l.b16 %v463
    %v601 = vunpack.c.l.b16 %v464
    %v602 = vunpack.c.l.b16 %v465
    %v603 = vpack.c.b16 %v588, %v587
    %v604 = vpack.c.b16 %v590, %v589
    %v605 = vpack.c.b16 %v592, %v591
    %v606 = vpack.c.b16 %v594, %v593
    %v607 = vpack.c.b16 %v596, %v595
    %v608 = vpack.c.b16 %v598, %v597
    %v609 = vpack.c.b16 %v600, %v599
    %v610 = vpack.c.b16 %v602, %v601
    %619 = vmatprep.subr.bf16.mxu0 0
    %620 = vmatpush1.bf16.msra.mxu0 %v603
    %621 = vmatprep.subr.bf16.mxu0 0
    %622 = vmatpush1.bf16.msra.mxu0 %v604
    %623 = vmatprep.subr.bf16.mxu0 0
    %624 = vmatpush1.bf16.msra.mxu0 %v605
    %625 = vmatprep.subr.bf16.mxu0 0
    %626 = vmatpush1.bf16.msra.mxu0 %v606
    %627 = vmatprep.subr.bf16.mxu0 0
    %628 = vmatpush1.bf16.msra.mxu0 %v607
    %629 = vmatprep.subr.bf16.mxu0 0
    %630 = vmatpush1.bf16.msra.mxu0 %v608
    %631 = vmatprep.subr.bf16.mxu0 0
    %632 = vmatpush1.bf16.msra.mxu0 %v609
    %633 = vmatprep.subr.bf16.mxu0 0
    %634 = vmatpush1.bf16.msra.mxu0 %v610
    %635 = vmatprep.subr.bf16.mxu0 0
    %636 = vmatpush1.bf16.msra.mxu0 0
    %637 = vmatprep.subr.bf16.mxu0 0
    %638 = vmatpush1.bf16.msra.mxu0 0
    %639 = vmatprep.subr.bf16.mxu0 0
    %640 = vmatpush1.bf16.msra.mxu0 0
    %641 = vmatprep.subr.bf16.mxu0 0
    %642 = vmatpush1.bf16.msra.mxu0 0
    %643 = vmatprep.subr.bf16.mxu0 0
    %644 = vmatpush1.bf16.msra.mxu0 0
    %645 = vmatprep.subr.bf16.mxu0 0
    %646 = vmatpush1.bf16.msra.mxu0 0
    %647 = vmatprep.subr.bf16.mxu0 0
    %648 = vmatpush1.bf16.msra.mxu0 0
    %649 = vmatprep.subr.bf16.mxu0 0
    %650 = vmatpush1.bf16.msra.mxu0 0
    %651 = vmatprep.mubr.bf16.mxu0 0
    %652 = vmatmul.mubr.bf16.gmra.mrb[0].mxu0 %v449
    %v653 = vpop.f32.mrb[0].mxu0
    %v654 = vadd.f32 %v566, %v653
    %v655 = vpop.f32.mrb[0].mxu0
    %v656 = vpop.f32.mrb[0].mxu0
    %v657 = vpop.f32.mrb[0].mxu0
    %658 = vdwg.mxu0
    %v659 = vld [vmem:[%s8] sm:$0x1]
    %v661 = vlaneseq
    %v662 = vshrl.u32 %v661, 7
    %v663 = vsub.s32 0, %v662
    %v664 = vrot.slane %v659, %v663
    %v666 = vadd.f32 %v654, %v664
    %667 = vst [vmem:[#allocation13] sm:$0xff] %v666
    // Predicated region
    $region62: #{tpu_custom_call.1} parent=1 // pred_check
      _
    $region63: #{tpu_custom_call.1} parent=1 // pred_check_branch
      %669 = sbr.rel (0) target = $region65
    $region64: #{tpu_custom_call.1} parent=1 // pred_region
      %s671 = ssub.s32 128, 128
      %672 = vsyncadd [#allocation4], %s671
      %s674 = sshll.u32 [#allocation13], 4
      %s675 = int_to_ptr.vmem [resolvable:$true] %s674
      %677 = dma.vmem_to_hbm [thread:$0]  %s675, 128, %s9, [#allocation4]
    $region65: #{tpu_custom_call.1} parent=1 // pred_fallthru
      _
    // Predicated region
    $region66: #{tpu_custom_call.1} parent=1 // pred_check
      _
    $region67: #{tpu_custom_call.1} parent=1 // pred_check_branch
      %679 = sbr.rel (0) target = $region69
    $region68: #{tpu_custom_call.1} parent=1 // pred_region
      %680 = dma.done [#allocation4], 128
    $region69: #{tpu_custom_call.1} parent=1 // pred_fallthru
      _
    %681 = vsyncpa [#allocation3], 1
    %682 = vsyncpa [#allocation6], 1
    %683 = vsyncpa [#allocation9], 1
    %684 = vsyncpa [#allocation12], 1
    %685 = vsyncpa [#allocation4], 1

</llo_original>
